<compile_context>
chip_gen: v5e
topology: v5e:2x2
jax: 0.10.0
libtpu: 0.0.40
codegen_flags: <defaults>
</compile_context>

<pallas_src>
import jax
import jax.numpy as jnp
from jax.experimental import pallas as pl
from jax.experimental.pallas import tpu as pltpu


def make_attention_kernel(num_heads, head_dim, block_b, seq, dim, out_dim):
    """Grid = (batch_blocks, num_heads). Each step: one batch block x one head."""

    def kernel(x_ref, wqkv_ref, wp_ref, bp_ref, o_ref, acc_ref):
        h = pl.program_id(1)
        mm_dtype = wqkv_ref.dtype            # MXU operand dtype (bf16 by default)
        rows = block_b * seq

        @pl.when(h == 0)
        def _init():
            acc_ref[...] = jnp.zeros_like(acc_ref)

        # (block_b, N, C) -> (block_b*N, C): merges leading dims only (free).
        x = x_ref[...].reshape(rows, dim)

        # Fused per-head q/k/v projection: columns are [q_h | k_h | v_h]; the softmax
        # scale is already folded into the q columns in the wrapper.
        qkv = jnp.dot(x, wqkv_ref[0], preferred_element_type=jnp.float32)

        # Static lane slices + leading-dim reshapes: no transposes, no dynamic
        # minor-dim indexing, no head split/merge relayouts.
        q = qkv[:, 0 * head_dim:1 * head_dim].reshape(block_b, seq, head_dim).astype(mm_dtype)
        k = qkv[:, 1 * head_dim:2 * head_dim].reshape(block_b, seq, head_dim).astype(mm_dtype)
        v = qkv[:, 2 * head_dim:3 * head_dim].reshape(block_b, seq, head_dim).astype(mm_dtype)

        # TODO(synk): flash-style KV tiling (online softmax over k/v sequence chunks)
        # for very long N, so the (block_b, N, N) score tile always fits v7x VMEM.
        s = jnp.einsum("bqd,bkd->bqk", q, k, preferred_element_type=jnp.float32)

        # Numerically-stable softmax in f32; normalization deferred until after PV.
        s = s - jnp.max(s, axis=-1, keepdims=True)
        p = jnp.exp(s)
        l = jnp.sum(p, axis=-1, keepdims=True)
        # attn_drop is identity (p = 0.0)

        o = jnp.einsum("bqk,bkd->bqd", p.astype(mm_dtype), v,
                       preferred_element_type=jnp.float32)
        o = o * pl.reciprocal(l, approx=True)        # EUP slot, ~free

        # Per-head slice of the output projection; the sum over heads is pure MXU
        # accumulation into the f32 scratch (no concat / relayout).
        acc_ref[...] += jnp.dot(o.reshape(rows, head_dim).astype(mm_dtype),
                                wp_ref[0], preferred_element_type=jnp.float32)

        @pl.when(h == num_heads - 1)
        def _finalize():
            out = acc_ref[...] + bp_ref[...].astype(jnp.float32)
            # proj_drop is identity (p = 0.0)
            o_ref[...] = out.reshape(block_b, seq, out_dim).astype(o_ref.dtype)

    return kernel


def attention_pallas(x, wq, wk, wv, wp, bp, num_heads, scale,
                     compute_dtype=jnp.bfloat16):
    """Forward pass of Attention (self-attention, qkv_bias=False, no mask, no dropout).

    compute_dtype: MXU operand dtype (default bf16 -> full-rate MXU). Accumulation,
    softmax math and the bias add stay f32; output dtype matches x.dtype.
    """
    B, N, C = x.shape
    out_dim = wp.shape[1]
    assert C % num_heads == 0
    head_dim = C // num_heads
    out_dtype = x.dtype

    mm_dtype = jnp.dtype(x.dtype if compute_dtype is None else compute_dtype)
    mm_bytes = mm_dtype.itemsize
    out_bytes = jnp.dtype(out_dtype).itemsize

    # ---- wrapper-side (one-time, XLA) weight repacking ------------------------
    # Per-head fused projection weight (H, C, 3*Dh): columns [q_h | k_h | v_h],
    # with the softmax scale folded into the q columns.
    wq_h = (wq * scale).reshape(C, num_heads, head_dim)
    wk_h = wk.reshape(C, num_heads, head_dim)
    wv_h = wv.reshape(C, num_heads, head_dim)
    w_heads = jnp.stack([wq_h, wk_h, wv_h], axis=2)                    # (C, H, 3, Dh)
    w_heads = jnp.transpose(w_heads, (1, 0, 2, 3)).reshape(
        num_heads, C, 3 * head_dim).astype(mm_dtype)                   # (H, C, 3*Dh)
    # Per-head slice of the output projection: (H, Dh, out_dim).
    wp_heads = wp.reshape(num_heads, head_dim, out_dim).astype(mm_dtype)
    bias = bp.reshape(1, out_dim).astype(jnp.float32)
    x_c = x.astype(mm_dtype)

    # ---- generation-aware block_b / VMEM budgeting ----------------------------
    try:
        vmem_cap = int(getattr(pltpu.get_tpu_info(), "vmem_capacity_bytes",
                               64 * 1024 * 1024))
    except Exception:
        vmem_cap = 64 * 1024 * 1024            # conservative (v7x per-core) fallback
    vmem_budget = int(vmem_cap * 0.75)
    # Bigger M blocks on 128 MiB parts (v5e/v6e); stay conservative on v7x (64 MiB).
    target_rows = 1024 if vmem_cap >= (96 * 1024 * 1024) else 512

    def est_vmem(bb):
        rows = bb * N
        weights = (2 * C * 3 * head_dim * mm_bytes            # per-head qkv W (x2 buf)
                   + 2 * head_dim * out_dim * mm_bytes        # per-head proj W (x2 buf)
                   + out_dim * 4)                             # bias (single buffer)
        io = 2 * rows * C * mm_bytes + 2 * rows * out_dim * out_bytes
        scratch = rows * out_dim * 4                          # f32 head-sum accumulator
        inter = (rows * 3 * head_dim * 4                      # qkv f32 result
                 + 3 * rows * head_dim * mm_bytes             # q/k/v operands
                 + 2 * bb * N * N * 4                         # scores + probs (one head)
                 + 2 * rows * head_dim * 4)                   # PV result
        return int(1.4 * (weights + io + scratch + inter))

    # Largest divisor of B that (a) leaves >= 2 "parallel" batch steps so both v7x
    # TensorCores get work, (b) keeps the MXU M-dim near target_rows, and (c) fits
    # the per-core VMEM budget.
    # TODO(synk): pad/mask a tail block for non-divisor B (prime B currently degrades
    # to block_b=1; still correct, just a smaller MXU M-dim).
    max_bb = max(1, B // 2) if B > 1 else 1
    block_b = 1
    for d in range(1, B + 1):
        if d > max_bb:
            break
        if B % d:
            continue
        if d > 1 and d * N > target_rows:
            continue
        if est_vmem(d) > vmem_budget:
            continue
        block_b = d
    grid = (B // block_b, num_heads)

    est = est_vmem(block_b)
    vmem_limit = int(min(max(2 * est, 32 * 1024 * 1024), int(0.9 * vmem_cap)))
    vmem_limit = max(vmem_limit, est)

    kernel = make_attention_kernel(num_heads, head_dim, block_b, N, C, out_dim)

    out = pl.pallas_call(
        kernel,
        out_shape=jax.ShapeDtypeStruct((B, N, out_dim), out_dtype),
        grid_spec=pltpu.PrefetchScalarGridSpec(
            num_scalar_prefetch=0,
            grid=grid,
            in_specs=[
                # x block: resident across the head axis (block index constant in h).
                pl.BlockSpec((block_b, N, C), lambda b, h: (b, 0, 0)),
                # Per-head fused qkv weight: streamed / prefetched per head.
                pl.BlockSpec((1, C, 3 * head_dim), lambda b, h: (h, 0, 0)),
                # Per-head slice of the output projection.
                pl.BlockSpec((1, head_dim, out_dim), lambda b, h: (h, 0, 0)),
                # Bias: constant block index -> single buffer (no double-buffer waste).
                pl.BlockSpec((1, out_dim), lambda b, h: (0, 0),
                             pipeline_mode=pl.Buffered(1)),
            ],
            out_specs=pl.BlockSpec((block_b, N, out_dim), lambda b, h: (b, 0, 0)),
            scratch_shapes=[
                pltpu.VMEM((block_b * N, out_dim), jnp.float32),   # head-sum accumulator
            ],
        ),
        compiler_params=pltpu.CompilerParams(
            dimension_semantics=("parallel", "arbitrary"),
            vmem_limit_bytes=vmem_limit,
        ),
    )(x_c, w_heads, wp_heads, bias)

    # No padded-output slice pass: small out_dim just uses a masked vst in-kernel.
    return out


def attention_reference(x, wq, wk, wv, wp, bp, num_heads, scale):
    """Pure-JAX reference mirroring the PyTorch forward."""
    B, N, C = x.shape
    head_dim = C // num_heads
    q = (x @ wq).reshape(B, N, num_heads, head_dim).transpose(0, 2, 1, 3)
    k = (x @ wk).reshape(B, N, num_heads, head_dim).transpose(0, 2, 1, 3)
    v = (x @ wv).reshape(B, N, num_heads, head_dim).transpose(0, 2, 1, 3)
    attn = jnp.einsum("bhnd,bhsd->bhns", q, k) * scale
    attn = jax.nn.softmax(attn, axis=-1)
    out = jnp.einsum("bhns,bhsd->bhnd", attn, v)
    out = out.transpose(0, 2, 1, 3).reshape(B, N, C)
    return out @ wp + bp


if __name__ == "__main__":
    # Small shapes consistent with the module: B=2, N=8, dim=32, num_heads=4.
    B, N, C = 2, 8, 32
    num_heads = 4
    head_dim = C // num_heads
    out_dim = C                       # out_dim=None -> dim
    scale = head_dim ** (-0.5)

    key = jax.random.PRNGKey(0)
    kx, kq, kk, kv, kp, kb = jax.random.split(key, 6)

    x = jax.random.normal(kx, (B, N, C), dtype=jnp.float32)
    # Deterministic parameter init (shapes from __init__); stored as [in, out].
    wq = jax.random.normal(kq, (C, C), dtype=jnp.float32) * 0.1
    wk = jax.random.normal(kk, (C, C), dtype=jnp.float32) * 0.1
    wv = jax.random.normal(kv, (C, C), dtype=jnp.float32) * 0.1
    wp = jax.random.normal(kp, (C, out_dim), dtype=jnp.float32) * 0.1
    bp = jax.random.normal(kb, (out_dim,), dtype=jnp.float32) * 0.1

    ref = attention_reference(x, wq, wk, wv, wp, bp, num_heads, scale)

    # Default path: bf16 MXU operands, f32 accumulation + f32 softmax.
    out_bf16 = attention_pallas(x, wq, wk, wv, wp, bp, num_heads, scale)
    out_bf16 = jax.block_until_ready(out_bf16)
    assert out_bf16.shape == (B, N, out_dim)
    assert jnp.allclose(out_bf16, ref, atol=5e-2, rtol=5e-2), "bf16 mismatch vs reference"

    # Full-f32 operand path (approx reciprocal -> slightly relaxed tolerance).
    out_f32 = attention_pallas(x, wq, wk, wv, wp, bp, num_heads, scale,
                               compute_dtype=jnp.float32)
    out_f32 = jax.block_until_ready(out_f32)
    assert out_f32.shape == (B, N, out_dim)
    assert jnp.allclose(out_f32, ref, atol=5e-3, rtol=5e-3), "f32 mismatch vs reference"

    # TODO(synk): mask argument, cross-attention (key/value != query), qkv_bias=True
    # and the qkv_fuse=True module path are not exercised (module defaults used).
    print("KERNEL_OK")
</pallas_src>

<mosaic_0001>
module attributes {stable_mosaic.version = 11 : i64} {
  func.func @kernel(%arg0: i32, %arg1: i32, %arg2: memref<1x8x32xbf16, #tpu.memory_space<vmem>>, %arg3: memref<1x32x24xbf16, #tpu.memory_space<vmem>>, %arg4: memref<1x8x32xbf16, #tpu.memory_space<vmem>>, %arg5: memref<1x32xf32, #tpu.memory_space<vmem>>, %arg6: memref<1x8x32xf32, #tpu.memory_space<vmem>>, %arg7: memref<8x32xf32, #tpu.memory_space<vmem>>) attributes {dimension_semantics = [#tpu.dimension_semantics<parallel>, #tpu.dimension_semantics<arbitrary>], iteration_bounds = array<i64: 2, 4>, scalar_prefetch = 0 : i64, scratch_operands = 1 : i64, tpu.core_type = #tpu.core_type<tc>, window_params = [{transform_indices = @transform_0, window_bounds = array<i64: 1, 8, 32>}, {transform_indices = @transform_1, window_bounds = array<i64: 1, 32, 24>}, {transform_indices = @transform_2, window_bounds = array<i64: 1, 8, 32>}, {pipeline_mode = #tpu.pipeline_mode<synchronous>, transform_indices = @transform_3, window_bounds = array<i64: 1, 32>}, {transform_indices = @transform_4, window_bounds = array<i64: 1, 8, 32>}]} {
    %c0_i32 = arith.constant 0 : i32
    %0 = arith.cmpi eq, %arg1, %c0_i32 : i32
    %1 = arith.extui %0 : i1 to i32
    %c0_i32_0 = arith.constant 0 : i32
    %2 = arith.cmpi ne, %1, %c0_i32_0 : i32
    scf.if %2 {
      %cst_19 = arith.constant 0.000000e+00 : f32
      %41 = vector.broadcast %cst_19 : f32 to vector<8x32xf32>
      %c0_20 = arith.constant 0 : index
      %c0_21 = arith.constant 0 : index
      %42 = vector.load %arg7[%c0_20, %c0_21] : memref<8x32xf32, #tpu.memory_space<vmem>>, vector<8x32xf32>
      tpu.vector_store %arg7[%c0_20, %c0_21], %41 {strides = array<i32>} : memref<8x32xf32, #tpu.memory_space<vmem>>, vector<8x32xf32>,
    } else {
    }
    %c0 = arith.constant 0 : index
    %c0_1 = arith.constant 0 : index
    %c0_2 = arith.constant 0 : index
    %3 = vector.load %arg2[%c0, %c0_1, %c0_2] : memref<1x8x32xbf16, #tpu.memory_space<vmem>>, vector<1x8x32xbf16>
    %4 = vector.shape_cast %3 : vector<1x8x32xbf16> to vector<8x32xbf16>
    %c0_3 = arith.constant 0 : index
    %c0_4 = arith.constant 0 : index
    %c0_5 = arith.constant 0 : index
    %5 = vector.load %arg3[%c0_3, %c0_4, %c0_5] : memref<1x32x24xbf16, #tpu.memory_space<vmem>>, vector<1x32x24xbf16>
    %6 = vector.shape_cast %5 : vector<1x32x24xbf16> to vector<32x24xbf16>
    %cst = arith.constant dense<0.000000e+00> : vector<8x24xf32>
    %7 = tpu.matmul %4, %6, %cst {dimension_numbers = #tpu.dot_dimension_numbers<[1], [0], [0], [1], [0, 0, 1, 1], [], []>} : vector<8x32xbf16>, vector<32x24xbf16>, vector<8x24xf32> -> vector<8x24xf32>
    %8 = vector.extract_strided_slice %7 {offsets = [0, 0], sizes = [8, 8], strides = [1, 1]} : vector<8x24xf32> to vector<8x8xf32>
    %9 = vector.shape_cast %8 : vector<8x8xf32> to vector<1x8x8xf32>
    %10 = arith.truncf %9 : vector<1x8x8xf32> to vector<1x8x8xbf16>
    %11 = vector.extract_strided_slice %7 {offsets = [0, 8], sizes = [8, 8], strides = [1, 1]} : vector<8x24xf32> to vector<8x8xf32>
    %12 = vector.shape_cast %11 : vector<8x8xf32> to vector<1x8x8xf32>
    %13 = arith.truncf %12 : vector<1x8x8xf32> to vector<1x8x8xbf16>
    %14 = vector.extract_strided_slice %7 {offsets = [0, 16], sizes = [8, 8], strides = [1, 1]} : vector<8x24xf32> to vector<8x8xf32>
    %15 = vector.shape_cast %14 : vector<8x8xf32> to vector<1x8x8xf32>
    %16 = arith.truncf %15 : vector<1x8x8xf32> to vector<1x8x8xbf16>
    "tpu.trace_start"() <{level = 10 : i32, message = "bqd,bkd->bqk"}> : () -> ()
    %cst_6 = arith.constant dense<0.000000e+00> : vector<1x8x8xf32>
    %17 = tpu.matmul %10, %13, %cst_6 {dimension_numbers = #tpu.dot_dimension_numbers<[2], [2], [1], [1], [0, 0, 0, 1, 1, 1], [0], [0]>} : vector<1x8x8xbf16>, vector<1x8x8xbf16>, vector<1x8x8xf32> -> vector<1x8x8xf32>
    "tpu.trace_stop"() : () -> ()
    %cst_7 = arith.constant dense<0xFF800000> : vector<1x8xf32>
    %18 = vector.multi_reduction <maximumf>, %17, %cst_7 [2] : vector<1x8x8xf32> to vector<1x8xf32>
    %19 = vector.shape_cast %18 : vector<1x8xf32> to vector<1x8x1xf32>
    %20 = vector.broadcast %19 : vector<1x8x1xf32> to vector<1x8x8xf32>
    %21 = arith.subf %17, %20 : vector<1x8x8xf32>
    %22 = math.exp %21 : vector<1x8x8xf32>
    %cst_8 = arith.constant dense<0.000000e+00> : vector<1x8xf32>
    %23 = vector.multi_reduction <add>, %22, %cst_8 [2] : vector<1x8x8xf32> to vector<1x8xf32>
    %24 = vector.shape_cast %23 : vector<1x8xf32> to vector<1x8x1xf32>
    %25 = arith.truncf %22 : vector<1x8x8xf32> to vector<1x8x8xbf16>
    "tpu.trace_start"() <{level = 10 : i32, message = "bqk,bkd->bqd"}> : () -> ()
    %cst_9 = arith.constant dense<0.000000e+00> : vector<1x8x8xf32>
    %26 = tpu.matmul %25, %16, %cst_9 {dimension_numbers = #tpu.dot_dimension_numbers<[2], [1], [1], [2], [0, 0, 0, 1, 1, 2], [0], [0]>} : vector<1x8x8xbf16>, vector<1x8x8xbf16>, vector<1x8x8xf32> -> vector<1x8x8xf32>
    "tpu.trace_stop"() : () -> ()
    %27 = tpu.reciprocal %24 {approx = true} : vector<1x8x1xf32> -> vector<1x8x1xf32>
    %28 = vector.broadcast %27 : vector<1x8x1xf32> to vector<1x8x8xf32>
    %29 = arith.mulf %26, %28 : vector<1x8x8xf32>
    %c0_10 = arith.constant 0 : index
    %c0_11 = arith.constant 0 : index
    %30 = vector.load %arg7[%c0_10, %c0_11] : memref<8x32xf32, #tpu.memory_space<vmem>>, vector<8x32xf32>
    %31 = vector.shape_cast %29 : vector<1x8x8xf32> to vector<8x8xf32>
    %32 = arith.truncf %31 : vector<8x8xf32> to vector<8x8xbf16>
    %c0_12 = arith.constant 0 : index
    %c0_13 = arith.constant 0 : index
    %c0_14 = arith.constant 0 : index
    %33 = vector.load %arg4[%c0_12, %c0_13, %c0_14] : memref<1x8x32xbf16, #tpu.memory_space<vmem>>, vector<1x8x32xbf16>
    %34 = vector.shape_cast %33 : vector<1x8x32xbf16> to vector<8x32xbf16>
    %cst_15 = arith.constant dense<0.000000e+00> : vector<8x32xf32>
    %35 = tpu.matmul %32, %34, %cst_15 {dimension_numbers = #tpu.dot_dimension_numbers<[1], [0], [0], [1], [0, 0, 1, 1], [], []>} : vector<8x8xbf16>, vector<8x32xbf16>, vector<8x32xf32> -> vector<8x32xf32>
    %36 = arith.addf %30, %35 : vector<8x32xf32>
    %c0_16 = arith.constant 0 : index
    %c0_17 = arith.constant 0 : index
    %37 = vector.load %arg7[%c0_16, %c0_17] : memref<8x32xf32, #tpu.memory_space<vmem>>, vector<8x32xf32>
    tpu.vector_store %arg7[%c0_16, %c0_17], %36 {strides = array<i32>} : memref<8x32xf32, #tpu.memory_space<vmem>>, vector<8x32xf32>,
    %c3_i32 = arith.constant 3 : i32
    %38 = arith.cmpi eq, %arg1, %c3_i32 : i32
    %39 = arith.extui %38 : i1 to i32
    %c0_i32_18 = arith.constant 0 : i32
    %40 = arith.cmpi ne, %39, %c0_i32_18 : i32
    scf.if %40 {
      %c0_19 = arith.constant 0 : index
      %c0_20 = arith.constant 0 : index
      %41 = vector.load %arg7[%c0_19, %c0_20] : memref<8x32xf32, #tpu.memory_space<vmem>>, vector<8x32xf32>
      %c0_21 = arith.constant 0 : index
      %c0_22 = arith.constant 0 : index
      %42 = vector.load %arg5[%c0_21, %c0_22] : memref<1x32xf32, #tpu.memory_space<vmem>>, vector<1x32xf32>
      %43 = vector.broadcast %42 : vector<1x32xf32> to vector<8x32xf32>
      %44 = arith.addf %41, %43 : vector<8x32xf32>
      %45 = vector.shape_cast %44 : vector<8x32xf32> to vector<1x8x32xf32>
      %c0_23 = arith.constant 0 : index
      %c0_24 = arith.constant 0 : index
      %c0_25 = arith.constant 0 : index
      %46 = vector.load %arg6[%c0_23, %c0_24, %c0_25] : memref<1x8x32xf32, #tpu.memory_space<vmem>>, vector<1x8x32xf32>
      tpu.vector_store %arg6[%c0_23, %c0_24, %c0_25], %45 {strides = array<i32>} : memref<1x8x32xf32, #tpu.memory_space<vmem>>, vector<1x8x32xf32>,
    } else {
    }
    return
  }
  func.func @transform_0(%arg0: i32, %arg1: i32) -> (i32, i32, i32) {
    %c0_i32 = arith.constant 0 : i32
    %c0_i32_0 = arith.constant 0 : i32
    %c0_i32_1 = arith.constant 0 : i32
    return %arg0, %c0_i32, %c0_i32_0 : i32, i32, i32
  }
  func.func @transform_1(%arg0: i32, %arg1: i32) -> (i32, i32, i32) {
    %c0_i32 = arith.constant 0 : i32
    %c0_i32_0 = arith.constant 0 : i32
    %c0_i32_1 = arith.constant 0 : i32
    return %arg1, %c0_i32, %c0_i32_0 : i32, i32, i32
  }
  func.func @transform_2(%arg0: i32, %arg1: i32) -> (i32, i32, i32) {
    %c0_i32 = arith.constant 0 : i32
    %c0_i32_0 = arith.constant 0 : i32
    %c0_i32_1 = arith.constant 0 : i32
    return %arg1, %c0_i32, %c0_i32_0 : i32, i32, i32
  }
  func.func @transform_3(%arg0: i32, %arg1: i32) -> (i32, i32) {
    %c0_i32 = arith.constant 0 : i32
    %c0_i32_0 = arith.constant 0 : i32
    %c0_i32_1 = arith.constant 0 : i32
    return %c0_i32, %c0_i32_0 : i32, i32
  }
  func.func @transform_4(%arg0: i32, %arg1: i32) -> (i32, i32, i32) {
    %c0_i32 = arith.constant 0 : i32
    %c0_i32_0 = arith.constant 0 : i32
    %c0_i32_1 = arith.constant 0 : i32
    return %arg0, %c0_i32, %c0_i32_0 : i32, i32, i32
  }
}

</mosaic_0001>

<llo_original>
// kernel: tpu_custom_call.1
$region0: #{tpu_custom_call.1}
  #allocation0 [shape = 'u32[]', space=smem, size = 0x4, offset = 0x4, fixed_abs, tag = 'smem constant byte address 0x4 - core index']
  #allocation1 [shape = 'u32[72,128]{1,0:T(1,128)}', space=vmem, size = 0x9000, scoped, tag = 'internal scratch']
  #allocation2 [shape = 'f32[8,32]{1,0:T(8,128)}', space=vmem, size = 0x1000, scoped, tag = 'scratch operand']
  %s0 = inlined_call_operand.vmem [shape: bf16[2,8,32], index: 0, kind: input, shape index: {}]
  %s1 = inlined_call_operand.vmem [shape: bf16[4,32,24], index: 1, kind: input, shape index: {}]
  %s2 = inlined_call_operand.vmem [shape: bf16[4,8,32], index: 2, kind: input, shape index: {}]
  %s3 = inlined_call_operand.vmem [shape: f32[1,32], index: 3, kind: input, shape index: {}]
  %s4 = inlined_call_operand.hbm [shape: f32[2,8,32], index: 4, kind: output, shape index: {}]
  %s5 = sld [smem:[#allocation0]]
  $region57: #{tpu_custom_call.1} parent=0
    _
  %s7 = ssub.s32 1, %s5
  %s8 = scalar_select 0, %s7, %s5
  $region1: #{tpu_custom_call.1} parent=0
    #allocation3 [shape = 'u8[8192]{0}', space=vmem, size = 0x2000, scoped, tag = 'output window, operand 0']
    #allocation4 [shape = 's32[2]{0}', space=sflag, size = 0x8, scoped, tag = 'scoped memory for tpu_custom_call.1']
    %9 = vsyncpa [#allocation4], 0
    %s10 = scalar_lea.sflag [#allocation4], 1
    %11 = vsyncpa %s10, 0
    loop: start=0, step=1, limit=10
    $region2: #{tpu_custom_call.1} parent=1 // loop_pre_header
      _
    $region3: #{tpu_custom_call.1} parent=1 // loop_header
      %s13 = sphi 0, %s17
      %p14 = scmp.ge.s32.totalorder %s13, 10
      %s20 = sphi 0, %s32
      %s21 = sphi 0, %s28
      %s22 = sphi 0, %s20
      %s23 = sphi 0, %s21
      %s24 = sphi 0, %s22
      %s25 = sphi 0, %s23
      %s35 = sphi 0, %s37
      %s38 = sphi 0, %s35
      %s39 = sphi 0, %s38
      %s55 = sphi 0, %s39
      %s61 = sphi 0, %s63
      %s64 = sphi 0, %s61
      %s65 = sphi 0, %s64
      %s81 = sphi 0, %s65
      %s87 = sphi 0, %s89
      %s90 = sphi 0, %s87
      %s91 = sphi 0, %s90
      %s107 = sphi 0, %s91
      %s111 = sphi 0, %s111
      %s113 = sphi 0, %s111
      %s114 = sphi 0, %s113
      %s128 = sphi 0, %s114
      %s134 = sphi 0, %s136
      %s137 = sphi 0, %s134
      %s138 = sphi 0, %s137
      %s154 = sphi 0, %s138
    $region4: #{tpu_custom_call.1} parent=1 // loop_header_branch
      %16 = sbr.rel (%p14) target = $region8
    $region5: #{tpu_custom_call.1} parent=1 // loop_body
      %s18 = ssub.s32 %s13, 1
      %s19 = ssub.s32 %s13, 2
      %s26 = sadd.s32 1, %s21
      %p27 = scmp.ge.s32.totalorder %s26, 4
      %s28 = scalar_select %p27, 0, %s26
      %s29 = sadd.s32 1, %s20
      %s30 = scalar_select %p27, %s29, %s20
      %p31 = scmp.ge.s32.totalorder %s30, 2
      %s32 = scalar_select %p31, 0, %s30
      %s33 = ssub.s32 %s20, %s32
      %p34 = scmp.eq.s32.totalorder %s33, 0
      %s36 = sadd.s32 %s35, 1
      %s37 = scalar_select %p34, %s35, %s36
      %p40 = pneg %p34
      %p41 = scmp.eq.s32.totalorder %s13, 7
      %p42 = por %p40, %p41
      %p43 = scmp.ne.s32.totalorder %s35, %s38
      %p44 = scmp.eq.s32.totalorder %s13, 0
      %p45 = por %p43, %p44
      %p46 = scmp.ne.s32.totalorder %s35, %s38
      %p47 = scmp.eq.s32.totalorder %s18, 7
      %p48 = por %p46, %p47
      %p49 = scmp.ne.s32.totalorder %s38, %s39
      %p50 = scmp.eq.s32.totalorder %s18, 0
      %p51 = por %p49, %p50
      %p52 = scmp.ne.s32.totalorder %s38, %s39
      %p53 = scmp.eq.s32.totalorder %s19, 7
      %p54 = por %p52, %p53
      %p56 = scmp.ne.s32.totalorder %s39, %s55
      %p57 = scmp.eq.s32.totalorder %s19, 0
      %p58 = por %p56, %p57
      %s59 = ssub.s32 %s21, %s28
      %p60 = scmp.eq.s32.totalorder %s59, 0
      %s62 = sadd.s32 %s61, 1
      %s63 = scalar_select %p60, %s61, %s62
      %p66 = pneg %p60
      %p67 = scmp.eq.s32.totalorder %s13, 7
      %p68 = por %p66, %p67
      %p69 = scmp.ne.s32.totalorder %s61, %s64
      %p70 = scmp.eq.s32.totalorder %s13, 0
      %p71 = por %p69, %p70
      %p72 = scmp.ne.s32.totalorder %s61, %s64
      %p73 = scmp.eq.s32.totalorder %s18, 7
      %p74 = por %p72, %p73
      %p75 = scmp.ne.s32.totalorder %s64, %s65
      %p76 = scmp.eq.s32.totalorder %s18, 0
      %p77 = por %p75, %p76
      %p78 = scmp.ne.s32.totalorder %s64, %s65
      %p79 = scmp.eq.s32.totalorder %s19, 7
      %p80 = por %p78, %p79
      %p82 = scmp.ne.s32.totalorder %s65, %s81
      %p83 = scmp.eq.s32.totalorder %s19, 0
      %p84 = por %p82, %p83
      %s85 = ssub.s32 %s21, %s28
      %p86 = scmp.eq.s32.totalorder %s85, 0
      %s88 = sadd.s32 %s87, 1
      %s89 = scalar_select %p86, %s87, %s88
      %p92 = pneg %p86
      %p93 = scmp.eq.s32.totalorder %s13, 7
      %p94 = por %p92, %p93
      %p95 = scmp.ne.s32.totalorder %s87, %s90
      %p96 = scmp.eq.s32.totalorder %s13, 0
      %p97 = por %p95, %p96
      %p98 = scmp.ne.s32.totalorder %s87, %s90
      %p99 = scmp.eq.s32.totalorder %s18, 7
      %p100 = por %p98, %p99
      %p101 = scmp.ne.s32.totalorder %s90, %s91
      %p102 = scmp.eq.s32.totalorder %s18, 0
      %p103 = por %p101, %p102
      %p104 = scmp.ne.s32.totalorder %s90, %s91
      %p105 = scmp.eq.s32.totalorder %s19, 7
      %p106 = por %p104, %p105
      %p108 = scmp.ne.s32.totalorder %s91, %s107
      %p109 = scmp.eq.s32.totalorder %s19, 0
      %p110 = por %p108, %p109
      %s112 = sadd.s32 %s111, 1
      %p115 = scmp.eq.s32.totalorder %s13, 7
      %p116 = scmp.ne.s32.totalorder %s111, %s113
      %p117 = scmp.eq.s32.totalorder %s13, 0
      %p118 = por %p116, %p117
      %p119 = scmp.ne.s32.totalorder %s111, %s113
      %p120 = scmp.eq.s32.totalorder %s18, 7
      %p121 = por %p119, %p120
      %p122 = scmp.ne.s32.totalorder %s113, %s114
      %p123 = scmp.eq.s32.totalorder %s18, 0
      %p124 = por %p122, %p123
      %p125 = scmp.ne.s32.totalorder %s113, %s114
      %p126 = scmp.eq.s32.totalorder %s19, 7
      %p127 = por %p125, %p126
      %p129 = scmp.ne.s32.totalorder %s114, %s128
      %p130 = scmp.eq.s32.totalorder %s19, 0
      %p131 = por %p129, %p130
      %s132 = ssub.s32 %s20, %s32
      %p133 = scmp.eq.s32.totalorder %s132, 0
      %s135 = sadd.s32 %s134, 1
      %s136 = scalar_select %p133, %s134, %s135
      %p139 = pneg %p133
      %p140 = scmp.eq.s32.totalorder %s13, 7
      %p141 = por %p139, %p140
      %p142 = scmp.ne.s32.totalorder %s134, %s137
      %p143 = scmp.eq.s32.totalorder %s13, 0
      %p144 = por %p142, %p143
      %p145 = scmp.ne.s32.totalorder %s134, %s137
      %p146 = scmp.eq.s32.totalorder %s18, 7
      %p147 = por %p145, %p146
      %p148 = scmp.ne.s32.totalorder %s137, %s138
      %p149 = scmp.eq.s32.totalorder %s18, 0
      %p150 = por %p148, %p149
      %p151 = scmp.ne.s32.totalorder %s137, %s138
      %p152 = scmp.eq.s32.totalorder %s19, 7
      %p153 = por %p151, %p152
      %p155 = scmp.ne.s32.totalorder %s138, %s154
      %p156 = scmp.eq.s32.totalorder %s19, 0
      %p157 = por %p155, %p156
      %p158 = scmp.le.s32.totalorder 1, %s13
      %p159 = scmp.lt.s32.totalorder %s13, 9
      %p160 = pnand %p158, %p159
      %p161 = pneg %p160
      // Predicated region
      $region9: #{tpu_custom_call.1} parent=5 // pred_check
        _
      $region10: #{tpu_custom_call.1} parent=5 // pred_check_branch
        %163 = sbr.rel (%p160) target = $region12
      $region11: #{tpu_custom_call.1} parent=5 // pred_region
        %s164 = ssub.s32 %s13, 1
        // Predicated region
        $region13: #{tpu_custom_call.1} parent=11 // pred_check
          %p165 = pneg %p124
        $region14: #{tpu_custom_call.1} parent=11 // pred_check_branch
          %167 = sbr.rel (%p165) target = $region16
        $region15: #{tpu_custom_call.1} parent=11 // pred_region
          _
        $region16: #{tpu_custom_call.1} parent=11 // pred_fallthru
          _
      $region12: #{tpu_custom_call.1} parent=5 // pred_fallthru
        _
      %p168 = scmp.lt.s32.totalorder %s13, 8
      // Predicated region
      $region17: #{tpu_custom_call.1} parent=5 // pred_check
        %p169 = pneg %p168
      $region18: #{tpu_custom_call.1} parent=5 // pred_check_branch
        %171 = sbr.rel (%p169) target = $region20
      $region19: #{tpu_custom_call.1} parent=5 // pred_region
        // Predicated region
        $region21: #{tpu_custom_call.1} parent=19 // pred_check
          %p172 = pneg %p45
        $region22: #{tpu_custom_call.1} parent=19 // pred_check_branch
          %174 = sbr.rel (%p172) target = $region24
        $region23: #{tpu_custom_call.1} parent=19 // pred_region
          %p175 = scmp.lt.s32.totalorder %s20, 1
          %s176 = scalar_select %p175, %s20, 1
          %s177 = smul.addr %s176, 4
          %s178 = scalar_lea.vmem %s0, %s177
        $region24: #{tpu_custom_call.1} parent=19 // pred_fallthru
          _
        // Predicated region
        $region25: #{tpu_custom_call.1} parent=19 // pred_check
          %p179 = pneg %p71
        $region26: #{tpu_custom_call.1} parent=19 // pred_check_branch
          %181 = sbr.rel (%p179) target = $region28
        $region27: #{tpu_custom_call.1} parent=19 // pred_region
          %p182 = scmp.lt.s32.totalorder %s21, 3
          %s183 = scalar_select %p182, %s21, 3
          %s184 = smul.addr %s183, 4
          %s185 = smul.addr %s184, 4
          %s186 = scalar_lea.vmem %s1, %s185
        $region28: #{tpu_custom_call.1} parent=19 // pred_fallthru
          _
        // Predicated region
        $region29: #{tpu_custom_call.1} parent=19 // pred_check
          %p187 = pneg %p97
        $region30: #{tpu_custom_call.1} parent=19 // pred_check_branch
          %189 = sbr.rel (%p187) target = $region32
        $region31: #{tpu_custom_call.1} parent=19 // pred_region
          %p190 = scmp.lt.s32.totalorder %s21, 3
          %s191 = scalar_select %p190, %s21, 3
          %s192 = smul.addr %s191, 4
          %s193 = scalar_lea.vmem %s2, %s192
        $region32: #{tpu_custom_call.1} parent=19 // pred_fallthru
          _
      $region20: #{tpu_custom_call.1} parent=5 // pred_fallthru
        _
      %p194 = scmp.le.s32.totalorder 1, %s13
      %p195 = scmp.lt.s32.totalorder %s13, 9
      %p196 = pnand %p194, %p195
      %p197 = pneg %p196
      // Predicated region
      $region33: #{tpu_custom_call.1} parent=5 // pred_check
        _
      $region34: #{tpu_custom_call.1} parent=5 // pred_check_branch
        %199 = sbr.rel (%p196) target = $region36
      $region35: #{tpu_custom_call.1} parent=5 // pred_region
        %s200 = ssub.s32 %s13, 1
        %p201 = scmp.lt.s32.totalorder %s22, 1
        %s202 = scalar_select %p201, %s22, 1
        %s203 = smul.addr %s202, 4
        %s204 = scalar_lea.vmem %s0, %s203
        %p205 = pneg %p51
        %p206 = pneg %p48
        %p207 = scmp.lt.s32.totalorder %s23, 3
        %s208 = scalar_select %p207, %s23, 3
        %s209 = smul.addr %s208, 4
        %s210 = smul.addr %s209, 4
        %s211 = scalar_lea.vmem %s1, %s210
        %p212 = pneg %p77
        %p213 = pneg %p74
        %p214 = scmp.lt.s32.totalorder %s23, 3
        %s215 = scalar_select %p214, %s23, 3
        %s216 = smul.addr %s215, 4
        %s217 = scalar_lea.vmem %s2, %s216
        %p218 = pneg %p103
        %p219 = pneg %p100
        %p220 = pneg %p124
        %p221 = pneg %p121
        %p222 = pneg %p150
        %p223 = pneg %p147
        %s224 = sand.u32 %s137, 1
        %s225 = scalar_lea.sflag [#allocation4], %s224
        %s226 = sand.u32 %s137, 1
        %s227 = smul.addr %s226, 8
        %s228 = scalar_lea.vmem [#allocation3], %s227
        %p229 = scmp.lt.s32.totalorder %s22, 1
        %s230 = scalar_select %p229, %s22, 1
        %s231 = smul.addr %s230, 4
        %s232 = scalar_lea.vmem %s0, %s231
        %p233 = scmp.lt.s32.totalorder %s23, 3
        %s234 = scalar_select %p233, %s23, 3
        %s235 = smul.addr %s234, 4
        %s236 = smul.addr %s235, 4
        %s237 = scalar_lea.vmem %s1, %s236
        %p238 = scmp.lt.s32.totalorder %s23, 3
        %s239 = scalar_select %p238, %s23, 3
        %s240 = smul.addr %s239, 4
        %s241 = scalar_lea.vmem %s2, %s240
        %p243 = scmp.eq.s32.totalorder %s23, 0
        // Predicated region
        $region37: #{tpu_custom_call.1} parent=35 // pred_check
          %p244 = pneg %p243
        $region38: #{tpu_custom_call.1} parent=35 // pred_check_branch
          %246 = sbr.rel (%p244) target = $region40
        $region39: #{tpu_custom_call.1} parent=35 // pred_region
          %vm247 = vcmask 261120
          %248 = vst.msk [vmem:[#allocation2] sm:$0xff] %vm247, 0.0
        $region40: #{tpu_custom_call.1} parent=35 // pred_fallthru
          _
        %v249 = vld [vmem:[%s232] sm:$0xf]
        %v250 = vld [vmem:[%s237] sm:$0xf]
        %v251 = vld [vmem:[%s237 + $0x4] sm:$0xf]
        %v252 = vld [vmem:[%s237 + $0x8] sm:$0xf]
        %v253 = vld [vmem:[%s237 + $0xc] sm:$0xf]
        %v258 = vunpack.c.l.b16 %v250
        %v259 = vunpack.c.l.b16 %v251
        %v260 = vunpack.c.l.b16 %v252
        %v261 = vunpack.c.l.b16 %v253
        %v262 = vpack.c.b16 %v259, %v258
        %v263 = vpack.c.b16 %v261, %v260
        %vm266 = vcmask 261120
        %v268 = vsel %vm266, %v249, 0
        %270 = vmatpush.bf16.msra.mxu0 0
        %271 = vmatpush.bf16.msra.mxu0 0
        %272 = vmatpush.bf16.msra.mxu0 0
        %273 = vmatpush.bf16.msra.mxu0 0
        %274 = vmatpush.bf16.msra.mxu0 0
        %275 = vmatpush.bf16.msra.mxu0 0
        %276 = vmatpush.bf16.msra.mxu0 %v263
        %277 = vmatpush.bf16.msra.mxu0 %v262
        %278 = vmatmul.bf16.gmra.mxu0 %v268
        %v279 = vpop.f32.mrf.mxu0
        %v280 = vadd.f32 0.0, %v279
        %v281 = vpop.f32.mrf.mxu0
        %282 = vdwg.mxu0
        %v283 = vpack.c.bf16 %v280, %v280
        %v285 = vunpack.c.l.b16 %v283
        %v286 = vpack.c.b16 %v285, %v285
        %287 = vrot.lane.b32.xlu0 %v286, 120
        %v288 = vpop.permute.xlu0 %287
        %vm289 = vcmask 64512
        %v291 = vsel %vm289, %v283, 0
        %v294 = vsel %vm289, %v288, 0
        %296 = vmatpush.bf16.xpose.msra.mxu0 0
        %297 = vmatpush.bf16.xpose.msra.mxu0 0
        %298 = vmatpush.bf16.xpose.msra.mxu0 0
        %299 = vmatpush.bf16.xpose.msra.mxu0 0
        %300 = vmatpush.bf16.xpose.msra.mxu0 0
        %301 = vmatpush.bf16.xpose.msra.mxu0 0
        %302 = vmatpush.bf16.xpose.msra.mxu0 0
        %303 = vmatpush.bf16.xpose.msra.mxu0 %v294
        %304 = vmatmul.bf16.gmra.mxu0 %v291
        %v305 = vpop.f32.mrf.mxu0
        %v306 = vadd.f32 0.0, %v305
        %v307 = vpop.f32.mrf.mxu0
        %308 = vdwg.mxu0
        %v309 = vsel %vm289, %v306, -inf
        %310 = vmax.xlane.f32.xlu0 %v309
        %v311 = vpop.xlane.xlu0 %310
        %v312 = vsub.f32 %v306, %v311
        %v313 = vmul.f32 %v312, 1.442695
        %v314 = vpow.pop %v313
        %v315 = vsel %vm289, %v314, 0.0
        %316 = vadd.xlane.f32.xlu0 %v315
        %v317 = vpop.xlane.xlu0 %316
        %v318 = vpack.c.bf16 %v314, %v314
        %319 = vrot.lane.b32.xlu0 %v286, 112
        %v320 = vpop.permute.xlu0 %319
        %v322 = vsel %vm289, %v318, 0
        %vm324 = vcmask 1043456
        %v326 = vsel %vm324, %v320, 0
        %328 = vmatpush.bf16.msra.mxu0 0
        %329 = vmatpush.bf16.msra.mxu0 0
        %330 = vmatpush.bf16.msra.mxu0 0
        %331 = vmatpush.bf16.msra.mxu0 0
        %332 = vmatpush.bf16.msra.mxu0 0
        %333 = vmatpush.bf16.msra.mxu0 0
        %334 = vmatpush.bf16.msra.mxu0 0
        %335 = vmatpush.bf16.msra.mxu0 %v326
        %336 = vmatmul.bf16.gmra.mxu0 %v322
        %v337 = vpop.f32.mrf.mxu0
        %v338 = vadd.f32 0.0, %v337
        %v339 = vpop.f32.mrf.mxu0
        %340 = vdwg.mxu0
        %v341 = vrcp.pop %v317
        %v342 = vmul.f32 %v338, %v341
        %v343 = vld [vmem:[#allocation2] sm:$0xff]
        %v344 = vpack.c.bf16 %v342, %v342
        %v345 = vld [vmem:[%s241] sm:$0xf]
        %v347 = vsel %vm289, %v344, 0
        %v350 = vsel %vm324, %v345, 0
        %352 = vmatpush.bf16.msra.mxu0 0
        %353 = vmatpush.bf16.msra.mxu0 0
        %354 = vmatpush.bf16.msra.mxu0 0
        %355 = vmatpush.bf16.msra.mxu0 0
        %356 = vmatpush.bf16.msra.mxu0 0
        %357 = vmatpush.bf16.msra.mxu0 0
        %358 = vmatpush.bf16.msra.mxu0 0
        %359 = vmatpush.bf16.msra.mxu0 %v350
        %360 = vmatmul.bf16.gmra.mxu0 %v347
        %v361 = vpop.f32.mrf.mxu0
        %v362 = vadd.f32 0.0, %v361
        %v363 = vpop.f32.mrf.mxu0
        %364 = vdwg.mxu0
        %v365 = vadd.f32 %v343, %v362
        %366 = vst.msk [vmem:[#allocation2] sm:$0xff] %vm266, %v365
        %p367 = scmp.eq.s32.totalorder %s23, 3
        // Predicated region
        $region41: #{tpu_custom_call.1} parent=35 // pred_check
          %p368 = pneg %p367
        $region42: #{tpu_custom_call.1} parent=35 // pred_check_branch
          %370 = sbr.rel (%p368) target = $region44
        $region43: #{tpu_custom_call.1} parent=35 // pred_region
          %v371 = vld [vmem:[#allocation2] sm:$0xff]
          %v372 = vld [vmem:[%s3] sm:$0x1]
          %v374 = vperm.slane %v372, 0
          %v376 = vadd.f32 %v371, %v374
          %377 = vst.msk [vmem:[%s228] sm:$0xff] %vm266, %v376
        $region44: #{tpu_custom_call.1} parent=35 // pred_fallthru
          _
        %s378 = sand.u32 %s137, 1
        %s379 = scalar_lea.sflag [#allocation4], %s378
        %s380 = sand.u32 %s137, 1
        %s381 = smul.addr %s380, 8
        %s382 = scalar_lea.vmem [#allocation3], %s381
        // Predicated region
        $region45: #{tpu_custom_call.1} parent=35 // pred_check
          %p383 = pneg %p147
        $region46: #{tpu_custom_call.1} parent=35 // pred_check_branch
          %385 = sbr.rel (%p383) target = $region48
        $region47: #{tpu_custom_call.1} parent=35 // pred_region
          %387 = vsyncadd %s379, 0
          %s388 = smul.addr %s22, 8
          %s389 = scalar_lea.hbm %s4, %s388
          %s391 = sshll.u32 %s382, 4
          %s392 = int_to_ptr.vmem [resolvable:$true] %s391
          %s393 = sshll.u32 %s389, 4
          %s394 = int_to_ptr.hbm [resolvable:$true] %s393
          %396 = dma.vmem_to_hbm [thread:$0]  %s392, 128, %s394, %s379
        $region48: #{tpu_custom_call.1} parent=35 // pred_fallthru
          _
      $region36: #{tpu_custom_call.1} parent=5 // pred_fallthru
        _
      %p397 = scmp.le.s32.totalorder 2, %s13
      // Predicated region
      $region49: #{tpu_custom_call.1} parent=5 // pred_check
        %p398 = pneg %p397
      $region50: #{tpu_custom_call.1} parent=5 // pred_check_branch
        %400 = sbr.rel (%p398) target = $region52
      $region51: #{tpu_custom_call.1} parent=5 // pred_region
        %s401 = ssub.s32 %s13, 2
        // Predicated region
        $region53: #{tpu_custom_call.1} parent=51 // pred_check
          %p402 = pneg %p153
        $region54: #{tpu_custom_call.1} parent=51 // pred_check_branch
          %404 = sbr.rel (%p402) target = $region56
        $region55: #{tpu_custom_call.1} parent=51 // pred_region
          %s405 = sand.u32 %s138, 1
          %s406 = scalar_lea.sflag [#allocation4], %s405
          %s407 = sand.u32 %s138, 1
          %s408 = smul.addr %s407, 8
          %s409 = scalar_lea.vmem [#allocation3], %s408
          %411 = dma.done %s406, 128
        $region56: #{tpu_custom_call.1} parent=51 // pred_fallthru
          _
      $region52: #{tpu_custom_call.1} parent=5 // pred_fallthru
        _
    $region6: #{tpu_custom_call.1} parent=1 // loop_footer
      %s17 = sadd.s32 1, %s13
    $region7: #{tpu_custom_call.1} parent=1 // loop_footer_branch
      %12 = sbr.rel target = $region3
    $region8: #{tpu_custom_call.1} parent=1 // loop_exit
      _
    %412 = vsyncpa [#allocation4], 1
    %s413 = scalar_lea.sflag [#allocation4], 1
    %414 = vsyncpa %s413, 1

</llo_original>
